<compile_context>
chip_gen: v7x
topology: tpu7x:2x2x1
jax: 0.10.0
libtpu: 0.0.40
codegen_flags: <defaults>
</compile_context>

<pallas_src>
import functools

import jax
import jax.numpy as jnp
import numpy as np
from jax.experimental import pallas as pl
from jax.experimental.pallas import tpu as pltpu

# 3x3 binomial blur weights (sum = 16) -- used by the pure-JAX reference.
_BLUR_W = ((1.0, 2.0, 1.0),
           (2.0, 4.0, 2.0),
           (1.0, 2.0, 1.0))


# ----------------------------- chip helpers ---------------------------------

def _device_kind():
    try:
        return jax.devices()[0].device_kind.lower()
    except Exception:
        return ""


def _is_v5e():
    k = _device_kind()
    return ("v5 lite" in k) or ("v5e" in k) or ("v5litepod" in k)


def _num_tensorcores():
    # v7x has 2 TensorCores per chip; earlier generations (and the CPU
    # interpreter) behave as a single core for our purposes.
    return 2 if "v7" in _device_kind() else 1


def _compute_dtype(dt):
    if dt == jnp.dtype(jnp.bfloat16):
        # bf16 VALU is native on v6e/v7x (blur weights are exact in bf16);
        # v5e has no bf16 VALU, so keep bf16 in HBM but compute in f32.
        return jnp.float32 if _is_v5e() else jnp.bfloat16
    if dt == jnp.dtype(jnp.float32):
        return jnp.float32
    return jnp.float32


def _rows_per_block(S, row_bytes, target_bytes, n_cores):
    """Pick the sublane block extent Sb (rows of the (S, H*W) slab)."""
    if S % 8 != 0:
        # The sublane block extent must be a multiple of 8 or the full dim.
        # TODO(synk): pad S up to a multiple of 8 for very large awkward N*C
        # instead of falling back to a single full-extent block.
        return S
    cap = max(8, (target_bytes // max(1, row_bytes)) // 8 * 8)
    sb = 8
    for cand in range(min(S, cap) // 8 * 8, 7, -8):
        if S % cand == 0:
            sb = cand
            break
    # Megacore load balance (v7x only): prefer an even grid-step count so the
    # two TensorCores get equal work; single-TC chips keep the biggest block.
    if n_cores > 1 and (S // sb) % 2 != 0 and S // sb < 2 * n_cores:
        for cand in range(sb - 8, 7, -8):
            if S % cand == 0 and (S // cand) % 2 == 0:
                sb = cand
                break
    return sb


# ------------------------------- kernel -------------------------------------

def _make_blur_kernel(W, cdt):
    """Separable 3x3 binomial blur on the flattened (rows, H*W) layout."""

    def kernel(x_ref, m_ref, o_ref):
        x = x_ref[...].astype(cdt)
        # Pre-scaled boundary masks (0.25 where the neighbour exists, else 0),
        # resident in VMEM for the whole grid.
        ml = m_ref[0:1, :]   # left   neighbour (col > 0)
        mr = m_ref[1:2, :]   # right  neighbour (col < W-1)
        mu = m_ref[2:3, :]   # up     neighbour (row > 0)
        md = m_ref[3:4, :]   # down   neighbour (row < H-1)
        # Horizontal [1,2,1]/4 pass: +-1 lane rolls within each image row.
        h = 0.5 * x + ml * jnp.roll(x, 1, axis=1) + mr * jnp.roll(x, -1, axis=1)
        # Vertical [1,2,1]/4 pass: +-W lane rolls in the flattened layout.
        y = 0.5 * h + mu * jnp.roll(h, W, axis=1) + md * jnp.roll(h, -W, axis=1)
        o_ref[...] = y.astype(o_ref.dtype)

    return kernel


def _blur_nchw(x):
    """3x3 binomial blur with zero padding, per (n, c) slice, via Pallas."""
    N, C, H, W = x.shape
    dt = x.dtype
    cdt = _compute_dtype(dt)
    S, L = N * C, H * W

    # Pre-scaled boundary masks over the flattened image axis. Passed as a
    # tiny input with a constant index_map, so it is DMA'd once and stays
    # resident while the grid streams the data blocks.
    li = np.arange(L)
    col, row = li % W, li // W
    masks = jnp.asarray(np.stack([
        np.where(col > 0, 0.25, 0.0),
        np.where(col < W - 1, 0.25, 0.0),
        np.where(row > 0, 0.25, 0.0),
        np.where(row < H - 1, 0.25, 0.0),
    ]), dtype=cdt)                                    # (4, L)

    # Contiguous reshape -> no HBM copy, no transposes. Lane-dense whenever
    # H*W is a multiple of 128 (it is for the BYOL-style image sizes); smaller
    # L falls back to the full-extent (masked-store) block.
    x2 = x.reshape(S, L)

    row_bytes = L * jnp.dtype(dt).itemsize
    Sb = _rows_per_block(S, row_bytes, target_bytes=2 << 20,
                         n_cores=_num_tensorcores())

    data_spec = pl.BlockSpec((Sb, L), lambda i: (i, 0))
    mask_spec = pl.BlockSpec((4, L), lambda i: (0, 0))

    y2 = pl.pallas_call(
        _make_blur_kernel(W, cdt),
        out_shape=jax.ShapeDtypeStruct((S, L), dt),
        grid=(S // Sb,),
        in_specs=[data_spec, mask_spec],
        out_specs=data_spec,
        compiler_params=pltpu.CompilerParams(
            dimension_semantics=("parallel",),
            vmem_limit_bytes=32 << 20),
    )(x2, masks)

    return y2.reshape(N, C, H, W)


# ------------------------------ RandomApply ----------------------------------

@functools.partial(jax.jit, static_argnames=("p",))
def random_apply_blur(x, p, key):
    """RandomApply(fn=3x3 gaussian blur, p=p) forward pass."""
    u = jax.random.uniform(key, (), jnp.float32)
    apply_fn = u <= jnp.float32(p)          # True with probability p
    # Gate hoisted out of the kernel: the identity branch skips the Pallas
    # call (and its full HBM read + write) entirely.
    out = jax.lax.cond(apply_fn, _blur_nchw, lambda v: v, x)
    return out, apply_fn


# ------------------------------- reference -----------------------------------

def _reference(x, apply_fn):
    # Pure-JAX reference of the same fn + gate (direct 3x3 zero-pad conv).
    xf = x.astype(jnp.float32)
    xp = jnp.pad(xf, ((0, 0), (0, 0), (1, 1), (1, 1)))
    H, W = x.shape[-2:]
    acc = jnp.zeros_like(xf)
    for di in range(3):
        for dj in range(3):
            acc = acc + (_BLUR_W[di][dj] / 16.0) * xp[:, :, di:di + H, dj:dj + W]
    return jnp.where(apply_fn, acc.astype(x.dtype), x)


if __name__ == "__main__":
    key = jax.random.PRNGKey(0)
    kx, kgate = jax.random.split(key)
    x = jax.random.normal(kx, (2, 4, 16, 16), jnp.float32)

    # p = 1.0 -> blur branch always taken (exercises the Pallas kernel).
    out_blur, flag_blur = random_apply_blur(x, p=1.0, key=kgate)
    out_blur = jax.block_until_ready(out_blur)
    assert bool(flag_blur)
    np.testing.assert_allclose(np.asarray(out_blur),
                               np.asarray(_reference(x, flag_blur)),
                               rtol=1e-5, atol=1e-5)

    # p = 0.0 -> identity branch (kernel skipped entirely).
    out_id, flag_id = random_apply_blur(x, p=0.0, key=kgate)
    out_id = jax.block_until_ready(out_id)
    np.testing.assert_allclose(np.asarray(out_id),
                               np.asarray(_reference(x, flag_id)),
                               rtol=1e-5, atol=1e-5)

    # The module's stochastic setting.
    out, flag = random_apply_blur(x, p=0.8, key=kgate)
    out = jax.block_until_ready(out)
    np.testing.assert_allclose(np.asarray(out),
                               np.asarray(_reference(x, flag)),
                               rtol=1e-5, atol=1e-5)

    # bf16 path (native bf16 compute on v6e/v7x, f32 compute on v5e): compare
    # against the f32-accumulate reference with a bf16-appropriate tolerance.
    xb = x.astype(jnp.bfloat16)
    out_bf, flag_bf = random_apply_blur(xb, p=1.0, key=kgate)
    out_bf = jax.block_until_ready(out_bf)
    np.testing.assert_allclose(np.asarray(out_bf, dtype=np.float32),
                               np.asarray(_reference(xb, flag_bf),
                                          dtype=np.float32),
                               rtol=5e-2, atol=5e-2)

    print("KERNEL_OK")
</pallas_src>

<mosaic_0001>
module attributes {stable_mosaic.version = 11 : i64} {
  func.func @kernel(%arg0: i32, %arg1: memref<8x256xf32, #tpu.memory_space<vmem>>, %arg2: memref<4x256xf32, #tpu.memory_space<vmem>>, %arg3: memref<8x256xf32, #tpu.memory_space<vmem>>) attributes {dimension_semantics = [#tpu.dimension_semantics<parallel>], iteration_bounds = array<i64: 1>, scalar_prefetch = 0 : i64, scratch_operands = 0 : i64, tpu.core_type = #tpu.core_type<tc>, window_params = [{transform_indices = @transform_0, window_bounds = array<i64: 8, 256>}, {pipeline_mode = #tpu.pipeline_mode<synchronous>, transform_indices = @transform_1, window_bounds = array<i64: 4, 256>}, {transform_indices = @transform_2, window_bounds = array<i64: 8, 256>}]} {
    %c0 = arith.constant 0 : index
    %c0_0 = arith.constant 0 : index
    %0 = vector.load %arg1[%c0, %c0_0] : memref<8x256xf32, #tpu.memory_space<vmem>>, vector<8x256xf32>
    %c0_1 = arith.constant 0 : index
    %c0_2 = arith.constant 0 : index
    %1 = vector.load %arg2[%c0_1, %c0_2] : memref<4x256xf32, #tpu.memory_space<vmem>>, vector<1x256xf32>
    %c1 = arith.constant 1 : index
    %c0_3 = arith.constant 0 : index
    %2 = vector.load %arg2[%c1, %c0_3] : memref<4x256xf32, #tpu.memory_space<vmem>>, vector<1x256xf32>
    %c2 = arith.constant 2 : index
    %c0_4 = arith.constant 0 : index
    %3 = vector.load %arg2[%c2, %c0_4] : memref<4x256xf32, #tpu.memory_space<vmem>>, vector<1x256xf32>
    %c3 = arith.constant 3 : index
    %c0_5 = arith.constant 0 : index
    %4 = vector.load %arg2[%c3, %c0_5] : memref<4x256xf32, #tpu.memory_space<vmem>>, vector<1x256xf32>
    %cst = arith.constant 5.000000e-01 : f32
    %5 = vector.broadcast %cst : f32 to vector<8x256xf32>
    %6 = arith.mulf %5, %0 : vector<8x256xf32>
    %7 = vector.extract_strided_slice %0 {offsets = [0, 255], sizes = [8, 1], strides = [1, 1]} : vector<8x256xf32> to vector<8x1xf32>
    %8 = vector.extract_strided_slice %0 {offsets = [0, 0], sizes = [8, 255], strides = [1, 1]} : vector<8x256xf32> to vector<8x255xf32>
    %9 = tpu.concatenate %7, %8 in 1 : vector<8x1xf32>, vector<8x255xf32> -> vector<8x256xf32>
    %10 = vector.broadcast %1 : vector<1x256xf32> to vector<8x256xf32>
    %11 = arith.mulf %10, %9 : vector<8x256xf32>
    %12 = arith.addf %6, %11 : vector<8x256xf32>
    %13 = vector.extract_strided_slice %0 {offsets = [0, 1], sizes = [8, 255], strides = [1, 1]} : vector<8x256xf32> to vector<8x255xf32>
    %14 = vector.extract_strided_slice %0 {offsets = [0, 0], sizes = [8, 1], strides = [1, 1]} : vector<8x256xf32> to vector<8x1xf32>
    %15 = tpu.concatenate %13, %14 in 1 : vector<8x255xf32>, vector<8x1xf32> -> vector<8x256xf32>
    %16 = vector.broadcast %2 : vector<1x256xf32> to vector<8x256xf32>
    %17 = arith.mulf %16, %15 : vector<8x256xf32>
    %18 = arith.addf %12, %17 : vector<8x256xf32>
    %cst_6 = arith.constant 5.000000e-01 : f32
    %19 = vector.broadcast %cst_6 : f32 to vector<8x256xf32>
    %20 = arith.mulf %19, %18 : vector<8x256xf32>
    %21 = vector.extract_strided_slice %18 {offsets = [0, 240], sizes = [8, 16], strides = [1, 1]} : vector<8x256xf32> to vector<8x16xf32>
    %22 = vector.extract_strided_slice %18 {offsets = [0, 0], sizes = [8, 240], strides = [1, 1]} : vector<8x256xf32> to vector<8x240xf32>
    %23 = tpu.concatenate %21, %22 in 1 : vector<8x16xf32>, vector<8x240xf32> -> vector<8x256xf32>
    %24 = vector.broadcast %3 : vector<1x256xf32> to vector<8x256xf32>
    %25 = arith.mulf %24, %23 : vector<8x256xf32>
    %26 = arith.addf %20, %25 : vector<8x256xf32>
    %27 = vector.extract_strided_slice %18 {offsets = [0, 16], sizes = [8, 240], strides = [1, 1]} : vector<8x256xf32> to vector<8x240xf32>
    %28 = vector.extract_strided_slice %18 {offsets = [0, 0], sizes = [8, 16], strides = [1, 1]} : vector<8x256xf32> to vector<8x16xf32>
    %29 = tpu.concatenate %27, %28 in 1 : vector<8x240xf32>, vector<8x16xf32> -> vector<8x256xf32>
    %30 = vector.broadcast %4 : vector<1x256xf32> to vector<8x256xf32>
    %31 = arith.mulf %30, %29 : vector<8x256xf32>
    %32 = arith.addf %26, %31 : vector<8x256xf32>
    %c0_7 = arith.constant 0 : index
    %c0_8 = arith.constant 0 : index
    %33 = vector.load %arg3[%c0_7, %c0_8] : memref<8x256xf32, #tpu.memory_space<vmem>>, vector<8x256xf32>
    tpu.vector_store %arg3[%c0_7, %c0_8], %32 {strides = array<i32>} : memref<8x256xf32, #tpu.memory_space<vmem>>, vector<8x256xf32>,
    return
  }
  func.func @transform_0(%arg0: i32) -> (i32, i32) {
    %c0_i32 = arith.constant 0 : i32
    %c0_i32_0 = arith.constant 0 : i32
    return %arg0, %c0_i32 : i32, i32
  }
  func.func @transform_1(%arg0: i32) -> (i32, i32) {
    %c0_i32 = arith.constant 0 : i32
    %c0_i32_0 = arith.constant 0 : i32
    %c0_i32_1 = arith.constant 0 : i32
    return %c0_i32, %c0_i32_0 : i32, i32
  }
  func.func @transform_2(%arg0: i32) -> (i32, i32) {
    %c0_i32 = arith.constant 0 : i32
    %c0_i32_0 = arith.constant 0 : i32
    return %arg0, %c0_i32 : i32, i32
  }
}

</mosaic_0001>

<llo_original>
// kernel: branch_1_fun.1
$region0: #{branch_1_fun.1}
  #allocation0 [shape = 'u32[]', space=smem, size = 0x4, offset = 0x4, fixed_abs, tag = 'smem constant byte address 0x4 - core index']
  #allocation1 [shape = 'u32[144,128]{1,0:T(1,128)}', space=vmem, size = 0x12000, scoped, tag = 'internal scratch']
  %s0 = inlined_call_operand.vmem [shape: f32[8,256], index: 0, kind: input, shape index: {}]
  %s1 = inlined_call_operand.vmem [shape: f32[4,256], index: 1, kind: input, shape index: {}]
  %s2 = inlined_call_operand.vmem [shape: f32[8,256], index: 2, kind: output, shape index: {}]
  %s3 = sld [smem:[#allocation0]]
  $region18: #{branch_1_fun.1} parent=0
    _
  %s5 = ssub.s32 1, %s3
  %s6 = scalar_select 0, %s5, %s3
  // Predicated region
  $region2: #{branch_1_fun.1} parent=0 // pred_check
    _
  $region3: #{branch_1_fun.1} parent=0 // pred_check_branch
    %8 = sbr.rel (0) target = $region5
  $region4: #{branch_1_fun.1} parent=0 // pred_region
    _
  $region5: #{branch_1_fun.1} parent=0 // pred_fallthru
    _
  // Predicated region
  $region6: #{branch_1_fun.1} parent=0 // pred_check
    _
  $region7: #{branch_1_fun.1} parent=0 // pred_check_branch
    %10 = sbr.rel (0) target = $region9
  $region8: #{branch_1_fun.1} parent=0 // pred_region
    _
  $region9: #{branch_1_fun.1} parent=0 // pred_fallthru
    _
  %v11 = vld [vmem:[%s0] sm:$0xff]
  %v12 = vld [vmem:[%s0 + $0x8] sm:$0xff]
  %v13 = vld [vmem:[%s1] ss:$4 sm:$0x3]
  %s14 = scalar_lea.vmem %s1, 1
  %v15 = vld [vmem:[%s14] ss:$4 sm:$0x3]
  %s16 = scalar_lea.vmem %s1, 2
  %v17 = vld [vmem:[%s16] ss:$4 sm:$0x3]
  %s18 = scalar_lea.vmem %s1, 3
  %v19 = vld [vmem:[%s18] ss:$4 sm:$0x3]
  %v20 = vmul.f32 %v11, 0.5
  %v21 = vmul.f32 %v12, 0.5
  %23 = vrot.lane.b32.xlu0 %v12, 1
  %v24 = vpop.permute.xlu0 %23
  %27 = vrot.lane.b32.xlu0 %v11, 1
  %v28 = vpop.permute.xlu0 %27
  %vm29 = vcmask 7168
  %v30 = vsel %vm29, %v28, %v24
  %v33 = vsel %vm29, %v24, %v28
  %v35 = vlaneseq
  %v36 = vshrl.u32 %v35, 7
  %v37 = vsub.s32 0, %v36
  %v38 = vrot.slane %v13, %v37
  %v39 = vlaneseq
  %v40 = vshrl.u32 %v39, 7
  %v41 = vsub.s32 1, %v40
  %v42 = vrot.slane %v13, %v41
  %v45 = vmul.f32 %v38, %v33
  %v46 = vmul.f32 %v42, %v30
  %v47 = vadd.f32 %v20, %v45
  %v48 = vadd.f32 %v21, %v46
  %49 = vrot.lane.b32.xlu0 %v11, 127
  %v50 = vpop.permute.xlu0 %49
  %51 = vrot.lane.b32.xlu0 %v12, 127
  %v52 = vpop.permute.xlu0 %51
  %vm53 = vcmask 1039360
  %v54 = vsel %vm53, %v50, %v52
  %v58 = vsel %vm53, %v52, %v50
  %v60 = vlaneseq
  %v61 = vshrl.u32 %v60, 7
  %v62 = vsub.s32 0, %v61
  %v63 = vrot.slane %v15, %v62
  %v64 = vlaneseq
  %v65 = vshrl.u32 %v64, 7
  %v66 = vsub.s32 1, %v65
  %v67 = vrot.slane %v15, %v66
  %v70 = vmul.f32 %v63, %v54
  %v71 = vmul.f32 %v67, %v58
  %v72 = vadd.f32 %v47, %v70
  %v73 = vadd.f32 %v48, %v71
  %v74 = vmul.f32 %v72, 0.5
  %v75 = vmul.f32 %v73, 0.5
  %77 = vrot.lane.b32.xlu0 %v73, 16
  %v78 = vpop.permute.xlu0 %77
  %81 = vrot.lane.b32.xlu0 %v72, 16
  %v82 = vpop.permute.xlu0 %81
  %vm83 = vcmask 130048
  %v84 = vsel %vm83, %v82, %v78
  %v87 = vsel %vm83, %v78, %v82
  %v89 = vlaneseq
  %v90 = vshrl.u32 %v89, 7
  %v91 = vsub.s32 0, %v90
  %v92 = vrot.slane %v17, %v91
  %v93 = vlaneseq
  %v94 = vshrl.u32 %v93, 7
  %v95 = vsub.s32 1, %v94
  %v96 = vrot.slane %v17, %v95
  %v99 = vmul.f32 %v92, %v87
  %v100 = vmul.f32 %v96, %v84
  %v101 = vadd.f32 %v74, %v99
  %v102 = vadd.f32 %v75, %v100
  %103 = vrot.lane.b32.xlu0 %v72, 112
  %v104 = vpop.permute.xlu0 %103
  %105 = vrot.lane.b32.xlu0 %v73, 112
  %v106 = vpop.permute.xlu0 %105
  %vm107 = vcmask 916480
  %v108 = vsel %vm107, %v104, %v106
  %v112 = vsel %vm107, %v106, %v104
  %v114 = vlaneseq
  %v115 = vshrl.u32 %v114, 7
  %v116 = vsub.s32 0, %v115
  %v117 = vrot.slane %v19, %v116
  %v118 = vlaneseq
  %v119 = vshrl.u32 %v118, 7
  %v120 = vsub.s32 1, %v119
  %v121 = vrot.slane %v19, %v120
  %v124 = vmul.f32 %v117, %v108
  %v125 = vmul.f32 %v121, %v112
  %v126 = vadd.f32 %v101, %v124
  %v127 = vadd.f32 %v102, %v125
  %128 = vst [vmem:[%s2] sm:$0xff] %v126
  %129 = vst [vmem:[%s2 + $0x8] sm:$0xff] %v127
  // Predicated region
  $region10: #{branch_1_fun.1} parent=0 // pred_check
    _
  $region11: #{branch_1_fun.1} parent=0 // pred_check_branch
    %131 = sbr.rel (0) target = $region13
  $region12: #{branch_1_fun.1} parent=0 // pred_region
    _
  $region13: #{branch_1_fun.1} parent=0 // pred_fallthru
    _
  // Predicated region
  $region14: #{branch_1_fun.1} parent=0 // pred_check
    _
  $region15: #{branch_1_fun.1} parent=0 // pred_check_branch
    %133 = sbr.rel (0) target = $region17
  $region16: #{branch_1_fun.1} parent=0 // pred_region
    _
  $region17: #{branch_1_fun.1} parent=0 // pred_fallthru
    _

</llo_original>
